<compile_context>
chip_gen: v6e
topology: v6e:2x2x1
jax: 0.10.0
libtpu: 0.0.40
codegen_flags: <defaults>
</compile_context>

<pallas_src>
import numpy as np
import jax
import jax.numpy as jnp
from jax.experimental import pallas as pl
from jax.experimental.pallas import tpu as pltpu


def _trend_block_kernel(x_ref, w1_ref, b1_ref, wh_ref, bh_ref, wout_ref, out_ref):
    """Single-step kernel; every operand is a full-array VMEM-resident block.

    x_ref:    (B, P*Tb)           target channels fused into the lane dim
    w1_ref:   (P*Tb, P*U)         block-diagonal first FC layer
    b1_ref:   (1, P*U)
    wh_ref:   (L1, P*U, P*U)      block-diagonal hidden FC layers
    bh_ref:   (L1, 1, P*U)
    wout_ref: (P*U, P*(Tb+Tf))    block-diag (theta_fc @ [T_backcast|T_forecast])
    out_ref:  (B, P*(Tb+Tf))      backcast|forecast, all targets, one store
    """
    h = jnp.dot(x_ref[...], w1_ref[...], preferred_element_type=jnp.float32)
    h = jnp.maximum(h + b1_ref[...], 0.0)
    for l in range(wh_ref.shape[0]):                  # static unroll; L1 is tiny
        h = jnp.dot(h, wh_ref[l], preferred_element_type=jnp.float32)
        h = jnp.maximum(h + bh_ref[l], 0.0)
    out_ref[...] = jnp.dot(h, wout_ref[...], preferred_element_type=jnp.float32)


def _block_diag(blocks):
    """blocks: (P, a, b) -> block-diagonal matrix (P*a, P*b)."""
    P, a, b = blocks.shape
    eye = jnp.eye(P, dtype=blocks.dtype)
    return jnp.einsum('pq,pij->piqj', eye, blocks).reshape(P * a, P * b)


@jax.jit
def nbeats_trend_block(x_btn, w1, b1, wh, bh, wt, tb_final, tf_final, tar_pos):
    """x_btn: (B, backcast_len, N) with N = tar_num + cov_num.
    Returns (backcast, forecast) in PyTorch layout:
    (B, backcast_len, P) and (B, forecast_len, P), P = len(tar_pos)."""
    B, Tb, N = x_btn.shape
    U = w1.shape[2]
    L1 = wh.shape[1]
    Tf = tf_final.shape[2]
    P = tar_pos.shape[0]
    To = Tb + Tf

    # ---------- one-time parameter packing (plain JAX; fused/folded by XLA) ----
    w1_p = jnp.take(w1, tar_pos, axis=0)            # (P, Tb, U)
    b1_p = jnp.take(b1, tar_pos, axis=0)            # (P, 1, U)
    wh_p = jnp.take(wh, tar_pos, axis=0)            # (P, L1, U, U)
    bh_p = jnp.take(bh, tar_pos, axis=0)            # (P, L1, 1, U)
    wt_p = jnp.take(wt, tar_pos, axis=0)            # (P, U, Th)
    tb_p = jnp.take(tb_final, tar_pos, axis=0)      # (P, Th, Tb)
    tf_p = jnp.take(tf_final, tar_pos, axis=0)      # (P, Th, Tf)

    # Fold the (shared, bias-free) theta projection into the trend basis and
    # concatenate backcast|forecast bases -> one tail matmul in the kernel.
    basis = jnp.concatenate([tb_p, tf_p], axis=-1)          # (P, Th, Tb+Tf)
    wout_p = jnp.einsum('put,ptk->puk', wt_p, basis)        # (P, U, Tb+Tf)

    # Fuse the P target channels into the lane dimension (block-diagonal weights).
    w1_bd = _block_diag(w1_p)                               # (P*Tb, P*U)
    wout_bd = _block_diag(wout_p)                           # (P*U, P*(Tb+Tf))
    eye = jnp.eye(P, dtype=wh_p.dtype)
    wh_bd = jnp.einsum('pq,plij->lpiqj', eye, wh_p).reshape(L1, P * U, P * U)
    b1_cat = b1_p.reshape(1, P * U)
    bh_cat = jnp.transpose(bh_p, (1, 0, 2, 3)).reshape(L1, 1, P * U)

    # x: gather target channels and fuse them into the lane dim -> (B, P*Tb)
    x_fused = jnp.transpose(jnp.take(x_btn, tar_pos, axis=2),
                            (0, 2, 1)).reshape(B, P * Tb).astype(jnp.float32)

    vmem = pl.BlockSpec(memory_space=pltpu.MemorySpace.VMEM)
    out = pl.pallas_call(
        _trend_block_kernel,
        out_shape=jax.ShapeDtypeStruct((B, P * To), jnp.float32),
        in_specs=[vmem] * 6,
        out_specs=vmem,
    )(x_fused, w1_bd, b1_cat, wh_bd, bh_cat, wout_bd)

    # Unpack to the PyTorch torch.stack(..., dim=2) convention.
    out = out.reshape(B, P, To)
    backcast = jnp.transpose(out[:, :, :Tb], (0, 2, 1))     # (B, Tb, P)
    forecast = jnp.transpose(out[:, :, Tb:], (0, 2, 1))     # (B, Tf, P)
    return backcast, forecast


def make_trend_basis(backcast_length, forecast_length, thetas_dim, n_chan,
                     w_agg, b_agg):
    """Builds T_backcast/T_forecast buffers (centered linspace, power basis)
    and applies the agg_layer Linear(N,1) per target -> (tar_num, Th, L)."""
    norm_ls = max(backcast_length, forecast_length)
    lin = np.linspace(-backcast_length / norm_ls,
                      (forecast_length - 1) / norm_ls,
                      backcast_length + forecast_length, dtype=np.float32)
    b_ls, f_ls = lin[:backcast_length], lin[backcast_length:]
    scale = np.float32(np.sqrt(forecast_length / thetas_dim))
    Tb = np.stack([b_ls ** i for i in range(thetas_dim)], 0)        # (Th, Lb)
    Tf = np.stack([f_ls ** i for i in range(thetas_dim)], 0)        # (Th, Lf)
    Tb = np.repeat(Tb[..., None], n_chan, axis=2) * scale           # (Th, Lb, N)
    Tf = np.repeat(Tf[..., None], n_chan, axis=2) * scale           # (Th, Lf, N)
    Tb_final = jnp.einsum('tln,in->itl', jnp.asarray(Tb), w_agg) + b_agg[:, None, None]
    Tf_final = jnp.einsum('tln,in->itl', jnp.asarray(Tf), w_agg) + b_agg[:, None, None]
    return Tb_final.astype(jnp.float32), Tf_final.astype(jnp.float32)


if __name__ == "__main__":
    # small shapes consistent with the module
    B = 8
    backcast_length = 16
    forecast_length = 8
    units = 32
    thetas_dim = 4
    num_block_layers = 4
    tar_num, cov_num = 2, 1
    tar_pos = [0, 1]
    N = tar_num + cov_num
    L1 = num_block_layers - 1

    key = jax.random.PRNGKey(0)
    ks = jax.random.split(key, 8)
    x = jax.random.normal(ks[0], (B, backcast_length, N), dtype=jnp.float32)

    # deterministic synthetic parameters (weights stored already transposed: in x out)
    w1 = 0.1 * jax.random.normal(ks[1], (N, backcast_length, units), dtype=jnp.float32)
    b1 = 0.1 * jax.random.normal(ks[2], (N, 1, units), dtype=jnp.float32)
    wh = 0.1 * jax.random.normal(ks[3], (N, L1, units, units), dtype=jnp.float32)
    bh = 0.1 * jax.random.normal(ks[4], (N, L1, 1, units), dtype=jnp.float32)
    wt = 0.1 * jax.random.normal(ks[5], (N, units, thetas_dim), dtype=jnp.float32)
    w_agg = 0.1 * jax.random.normal(ks[6], (tar_num, N), dtype=jnp.float32)
    b_agg = 0.1 * jax.random.normal(ks[7], (tar_num,), dtype=jnp.float32)

    tb_final, tf_final = make_trend_basis(backcast_length, forecast_length,
                                          thetas_dim, N, w_agg, b_agg)
    tar_pos_arr = jnp.asarray(tar_pos, dtype=jnp.int32)

    back, fore = nbeats_trend_block(x, w1, b1, wh, bh, wt,
                                    tb_final, tf_final, tar_pos_arr)
    back, fore = jax.block_until_ready((back, fore))

    # pure-JAX reference of the PyTorch forward (inference, dropout = identity)
    def reference():
        outs_b, outs_f = [], []
        for n in tar_pos:
            h = jnp.maximum(x[:, :, n] @ w1[n] + b1[n, 0], 0.0)
            for l in range(L1):
                h = jnp.maximum(h @ wh[n, l] + bh[n, l, 0], 0.0)
            theta = h @ wt[n]                      # shared theta_b / theta_f
            outs_b.append(theta @ tb_final[n])
            outs_f.append(theta @ tf_final[n])
        return jnp.stack(outs_b, 2), jnp.stack(outs_f, 2)

    rb, rf = reference()
    assert back.shape == (B, backcast_length, len(tar_pos))
    assert fore.shape == (B, forecast_length, len(tar_pos))
    np.testing.assert_allclose(np.asarray(back), np.asarray(rb), rtol=2e-3, atol=2e-3)
    np.testing.assert_allclose(np.asarray(fore), np.asarray(rf), rtol=2e-3, atol=2e-3)
    print("KERNEL_OK")
</pallas_src>

<mosaic_0001>
module attributes {stable_mosaic.version = 11 : i64} {
  func.func @_trend_block_kernel(%arg0: memref<8x32xf32, #tpu.memory_space<vmem>>, %arg1: memref<32x64xf32, #tpu.memory_space<vmem>>, %arg2: memref<1x64xf32, #tpu.memory_space<vmem>>, %arg3: memref<3x64x64xf32, #tpu.memory_space<vmem>>, %arg4: memref<3x1x64xf32, #tpu.memory_space<vmem>>, %arg5: memref<64x48xf32, #tpu.memory_space<vmem>>, %arg6: memref<8x48xf32, #tpu.memory_space<vmem>>) attributes {dimension_semantics = [], scalar_prefetch = 0 : i64, scratch_operands = 0 : i64, tpu.core_type = #tpu.core_type<tc>} {
    %c0 = arith.constant 0 : index
    %c0_0 = arith.constant 0 : index
    %0 = vector.load %arg0[%c0, %c0_0] : memref<8x32xf32, #tpu.memory_space<vmem>>, vector<8x32xf32>
    %c0_1 = arith.constant 0 : index
    %c0_2 = arith.constant 0 : index
    %1 = vector.load %arg1[%c0_1, %c0_2] : memref<32x64xf32, #tpu.memory_space<vmem>>, vector<32x64xf32>
    %cst = arith.constant dense<0.000000e+00> : vector<8x64xf32>
    %2 = tpu.matmul %0, %1, %cst {dimension_numbers = #tpu.dot_dimension_numbers<[1], [0], [0], [1], [0, 0, 1, 1], [], []>} : vector<8x32xf32>, vector<32x64xf32>, vector<8x64xf32> -> vector<8x64xf32>
    %c0_3 = arith.constant 0 : index
    %c0_4 = arith.constant 0 : index
    %3 = vector.load %arg2[%c0_3, %c0_4] : memref<1x64xf32, #tpu.memory_space<vmem>>, vector<1x64xf32>
    %4 = vector.broadcast %3 : vector<1x64xf32> to vector<8x64xf32>
    %5 = arith.addf %2, %4 : vector<8x64xf32>
    %cst_5 = arith.constant 0.000000e+00 : f32
    %6 = vector.broadcast %cst_5 : f32 to vector<8x64xf32>
    %7 = arith.maximumf %5, %6 : vector<8x64xf32>
    %c0_6 = arith.constant 0 : index
    %c0_7 = arith.constant 0 : index
    %c0_8 = arith.constant 0 : index
    %8 = vector.load %arg3[%c0_6, %c0_7, %c0_8] : memref<3x64x64xf32, #tpu.memory_space<vmem>>, vector<1x64x64xf32>
    %9 = vector.shape_cast %8 : vector<1x64x64xf32> to vector<64x64xf32>
    %cst_9 = arith.constant dense<0.000000e+00> : vector<8x64xf32>
    %10 = tpu.matmul %7, %9, %cst_9 {dimension_numbers = #tpu.dot_dimension_numbers<[1], [0], [0], [1], [0, 0, 1, 1], [], []>} : vector<8x64xf32>, vector<64x64xf32>, vector<8x64xf32> -> vector<8x64xf32>
    %c0_10 = arith.constant 0 : index
    %c0_11 = arith.constant 0 : index
    %c0_12 = arith.constant 0 : index
    %11 = vector.load %arg4[%c0_10, %c0_11, %c0_12] : memref<3x1x64xf32, #tpu.memory_space<vmem>>, vector<1x1x64xf32>
    %12 = vector.shape_cast %11 : vector<1x1x64xf32> to vector<1x64xf32>
    %13 = vector.broadcast %12 : vector<1x64xf32> to vector<8x64xf32>
    %14 = arith.addf %10, %13 : vector<8x64xf32>
    %cst_13 = arith.constant 0.000000e+00 : f32
    %15 = vector.broadcast %cst_13 : f32 to vector<8x64xf32>
    %16 = arith.maximumf %14, %15 : vector<8x64xf32>
    %c1 = arith.constant 1 : index
    %c0_14 = arith.constant 0 : index
    %c0_15 = arith.constant 0 : index
    %17 = vector.load %arg3[%c1, %c0_14, %c0_15] : memref<3x64x64xf32, #tpu.memory_space<vmem>>, vector<1x64x64xf32>
    %18 = vector.shape_cast %17 : vector<1x64x64xf32> to vector<64x64xf32>
    %cst_16 = arith.constant dense<0.000000e+00> : vector<8x64xf32>
    %19 = tpu.matmul %16, %18, %cst_16 {dimension_numbers = #tpu.dot_dimension_numbers<[1], [0], [0], [1], [0, 0, 1, 1], [], []>} : vector<8x64xf32>, vector<64x64xf32>, vector<8x64xf32> -> vector<8x64xf32>
    %c1_17 = arith.constant 1 : index
    %c0_18 = arith.constant 0 : index
    %c0_19 = arith.constant 0 : index
    %20 = vector.load %arg4[%c1_17, %c0_18, %c0_19] : memref<3x1x64xf32, #tpu.memory_space<vmem>>, vector<1x1x64xf32>
    %21 = vector.shape_cast %20 : vector<1x1x64xf32> to vector<1x64xf32>
    %22 = vector.broadcast %21 : vector<1x64xf32> to vector<8x64xf32>
    %23 = arith.addf %19, %22 : vector<8x64xf32>
    %cst_20 = arith.constant 0.000000e+00 : f32
    %24 = vector.broadcast %cst_20 : f32 to vector<8x64xf32>
    %25 = arith.maximumf %23, %24 : vector<8x64xf32>
    %c2 = arith.constant 2 : index
    %c0_21 = arith.constant 0 : index
    %c0_22 = arith.constant 0 : index
    %26 = vector.load %arg3[%c2, %c0_21, %c0_22] : memref<3x64x64xf32, #tpu.memory_space<vmem>>, vector<1x64x64xf32>
    %27 = vector.shape_cast %26 : vector<1x64x64xf32> to vector<64x64xf32>
    %cst_23 = arith.constant dense<0.000000e+00> : vector<8x64xf32>
    %28 = tpu.matmul %25, %27, %cst_23 {dimension_numbers = #tpu.dot_dimension_numbers<[1], [0], [0], [1], [0, 0, 1, 1], [], []>} : vector<8x64xf32>, vector<64x64xf32>, vector<8x64xf32> -> vector<8x64xf32>
    %c2_24 = arith.constant 2 : index
    %c0_25 = arith.constant 0 : index
    %c0_26 = arith.constant 0 : index
    %29 = vector.load %arg4[%c2_24, %c0_25, %c0_26] : memref<3x1x64xf32, #tpu.memory_space<vmem>>, vector<1x1x64xf32>
    %30 = vector.shape_cast %29 : vector<1x1x64xf32> to vector<1x64xf32>
    %31 = vector.broadcast %30 : vector<1x64xf32> to vector<8x64xf32>
    %32 = arith.addf %28, %31 : vector<8x64xf32>
    %cst_27 = arith.constant 0.000000e+00 : f32
    %33 = vector.broadcast %cst_27 : f32 to vector<8x64xf32>
    %34 = arith.maximumf %32, %33 : vector<8x64xf32>
    %c0_28 = arith.constant 0 : index
    %c0_29 = arith.constant 0 : index
    %35 = vector.load %arg5[%c0_28, %c0_29] : memref<64x48xf32, #tpu.memory_space<vmem>>, vector<64x48xf32>
    %cst_30 = arith.constant dense<0.000000e+00> : vector<8x48xf32>
    %36 = tpu.matmul %34, %35, %cst_30 {dimension_numbers = #tpu.dot_dimension_numbers<[1], [0], [0], [1], [0, 0, 1, 1], [], []>} : vector<8x64xf32>, vector<64x48xf32>, vector<8x48xf32> -> vector<8x48xf32>
    %c0_31 = arith.constant 0 : index
    %c0_32 = arith.constant 0 : index
    %37 = vector.load %arg6[%c0_31, %c0_32] : memref<8x48xf32, #tpu.memory_space<vmem>>, vector<8x48xf32>
    tpu.vector_store %arg6[%c0_31, %c0_32], %36 {strides = array<i32>} : memref<8x48xf32, #tpu.memory_space<vmem>>, vector<8x48xf32>,
    return
  }
}

</mosaic_0001>

<llo_original>
// kernel: nbeats_trend_block.1
$region0: #{nbeats_trend_block.1}
  #allocation0 [shape = 'u32[]', space=smem, size = 0x4, offset = 0x4, fixed_abs, tag = 'smem constant byte address 0x4 - core index']
  #allocation1 [shape = 'u32[144,128]{1,0:T(1,128)}', space=vmem, size = 0x12000, scoped, tag = 'internal scratch']
  %s0 = inlined_call_operand.vmem [shape: f32[8,32], index: 0, kind: input, shape index: {}]
  %s1 = inlined_call_operand.vmem [shape: f32[32,64], index: 1, kind: input, shape index: {}]
  %s2 = inlined_call_operand.vmem [shape: f32[1,64], index: 2, kind: input, shape index: {}]
  %s3 = inlined_call_operand.vmem [shape: f32[3,64,64], index: 3, kind: input, shape index: {}]
  %s4 = inlined_call_operand.vmem [shape: f32[3,1,64], index: 4, kind: input, shape index: {}]
  %s5 = inlined_call_operand.vmem [shape: f32[64,48], index: 5, kind: input, shape index: {}]
  %s6 = inlined_call_operand.vmem [shape: f32[8,48], index: 6, kind: output, shape index: {}]
  %s7 = sld [smem:[#allocation0]]
  $region34: #{nbeats_trend_block.1} parent=0
    _
  %s9 = ssub.s32 1, %s7
  %s10 = scalar_select 0, %s9, %s7
  // Predicated region
  $region2: #{nbeats_trend_block.1} parent=0 // pred_check
    _
  $region3: #{nbeats_trend_block.1} parent=0 // pred_check_branch
    %12 = sbr.rel (0) target = $region5
  $region4: #{nbeats_trend_block.1} parent=0 // pred_region
    _
  $region5: #{nbeats_trend_block.1} parent=0 // pred_fallthru
    _
  // Predicated region
  $region6: #{nbeats_trend_block.1} parent=0 // pred_check
    _
  $region7: #{nbeats_trend_block.1} parent=0 // pred_check_branch
    %14 = sbr.rel (0) target = $region9
  $region8: #{nbeats_trend_block.1} parent=0 // pred_region
    _
  $region9: #{nbeats_trend_block.1} parent=0 // pred_fallthru
    _
  // Predicated region
  $region10: #{nbeats_trend_block.1} parent=0 // pred_check
    _
  $region11: #{nbeats_trend_block.1} parent=0 // pred_check_branch
    %16 = sbr.rel (0) target = $region13
  $region12: #{nbeats_trend_block.1} parent=0 // pred_region
    _
  $region13: #{nbeats_trend_block.1} parent=0 // pred_fallthru
    _
  // Predicated region
  $region14: #{nbeats_trend_block.1} parent=0 // pred_check
    _
  $region15: #{nbeats_trend_block.1} parent=0 // pred_check_branch
    %18 = sbr.rel (0) target = $region17
  $region16: #{nbeats_trend_block.1} parent=0 // pred_region
    _
  $region17: #{nbeats_trend_block.1} parent=0 // pred_fallthru
    _
  // Predicated region
  $region18: #{nbeats_trend_block.1} parent=0 // pred_check
    _
  $region19: #{nbeats_trend_block.1} parent=0 // pred_check_branch
    %20 = sbr.rel (0) target = $region21
  $region20: #{nbeats_trend_block.1} parent=0 // pred_region
    _
  $region21: #{nbeats_trend_block.1} parent=0 // pred_fallthru
    _
  // Predicated region
  $region22: #{nbeats_trend_block.1} parent=0 // pred_check
    _
  $region23: #{nbeats_trend_block.1} parent=0 // pred_check_branch
    %22 = sbr.rel (0) target = $region25
  $region24: #{nbeats_trend_block.1} parent=0 // pred_region
    _
  $region25: #{nbeats_trend_block.1} parent=0 // pred_fallthru
    _
  %v23 = vld [vmem:[%s0] sm:$0xff]
  %v24 = vld [vmem:[%s1] sm:$0xff]
  %v25 = vld [vmem:[%s1 + $0x8] sm:$0xff]
  %v26 = vld [vmem:[%s1 + $0x10] sm:$0xff]
  %v27 = vld [vmem:[%s1 + $0x18] sm:$0xff]
  %v28 = vld [vmem:[%s2] sm:$0x1]
  %v30 = vlaneseq
  %v31 = vshrl.u32 %v30, 7
  %v32 = vsub.s32 0, %v31
  %v33 = vrot.slane %v28, %v32
  %vm35 = vcmask 261120
  %v37 = vsel %vm35, %v23, 0
  %39 = vmatprep.subr.mxu0 0.0
  %40 = vmatpush1.msra.mxu0 0.0
  %41 = vmatprep.subr.mxu0 0.0
  %42 = vmatpush1.msra.mxu0 0.0
  %43 = vmatprep.subr.mxu0 0.0
  %44 = vmatpush1.msra.mxu0 0.0
  %45 = vmatprep.subr.mxu0 0.0
  %46 = vmatpush1.msra.mxu0 0.0
  %47 = vmatprep.subr.mxu0 0.0
  %48 = vmatpush1.msra.mxu0 0.0
  %49 = vmatprep.subr.mxu0 0.0
  %50 = vmatpush1.msra.mxu0 0.0
  %51 = vmatprep.subr.mxu0 0.0
  %52 = vmatpush1.msra.mxu0 0.0
  %53 = vmatprep.subr.mxu0 0.0
  %54 = vmatpush1.msra.mxu0 0.0
  %55 = vmatprep.subr.mxu0 0.0
  %56 = vmatpush1.msra.mxu0 0.0
  %57 = vmatprep.subr.mxu0 0.0
  %58 = vmatpush1.msra.mxu0 0.0
  %59 = vmatprep.subr.mxu0 0.0
  %60 = vmatpush1.msra.mxu0 0.0
  %61 = vmatprep.subr.mxu0 0.0
  %62 = vmatpush1.msra.mxu0 0.0
  %63 = vmatprep.subr.mxu0 0.0
  %64 = vmatpush1.msra.mxu0 %v27
  %65 = vmatprep.subr.mxu0 0.0
  %66 = vmatpush1.msra.mxu0 %v26
  %67 = vmatprep.subr.mxu0 0.0
  %68 = vmatpush1.msra.mxu0 %v25
  %69 = vmatprep.subr.mxu0 0.0
  %70 = vmatpush1.msra.mxu0 %v24
  %71 = vmatprep.subr.mxu0 0.0
  %72 = vmatpush2.msra.mxu0 0.0
  %73 = vmatprep.subr.mxu0 0.0
  %74 = vmatpush2.msra.mxu0 0.0
  %75 = vmatprep.subr.mxu0 0.0
  %76 = vmatpush2.msra.mxu0 0.0
  %77 = vmatprep.subr.mxu0 0.0
  %78 = vmatpush2.msra.mxu0 0.0
  %79 = vmatprep.subr.mxu0 0.0
  %80 = vmatpush2.msra.mxu0 0.0
  %81 = vmatprep.subr.mxu0 0.0
  %82 = vmatpush2.msra.mxu0 0.0
  %83 = vmatprep.subr.mxu0 0.0
  %84 = vmatpush2.msra.mxu0 0.0
  %85 = vmatprep.subr.mxu0 0.0
  %86 = vmatpush2.msra.mxu0 0.0
  %87 = vmatprep.subr.mxu0 0.0
  %88 = vmatpush2.msra.mxu0 0.0
  %89 = vmatprep.subr.mxu0 0.0
  %90 = vmatpush2.msra.mxu0 0.0
  %91 = vmatprep.subr.mxu0 0.0
  %92 = vmatpush2.msra.mxu0 0.0
  %93 = vmatprep.subr.mxu0 0.0
  %94 = vmatpush2.msra.mxu0 0.0
  %95 = vmatprep.subr.mxu0 0.0
  %96 = vmatpush2.msra.mxu0 0.0
  %97 = vmatprep.subr.mxu0 0.0
  %98 = vmatpush2.msra.mxu0 0.0
  %99 = vmatprep.subr.mxu0 0.0
  %100 = vmatpush2.msra.mxu0 0.0
  %101 = vmatprep.subr.mxu0 0.0
  %102 = vmatpush2.msra.mxu0 0.0
  %103 = vmatprep.mubr.f32.mxu0 0.0
  %104 = vmatmul.mubr.f32.gmra.mxu0 %v37
  %v105 = vpop.f32.mrf.mxu0
  %v106 = vadd.f32 %v33, %v105
  %v107 = vpop.f32.mrf.mxu0
  %108 = vdwg.mxu0
  %v109 = vmax.f32 %v106, 0.0
  %v110 = vld [vmem:[%s3] sm:$0xff]
  %v111 = vld [vmem:[%s3 + $0x8] sm:$0xff]
  %v112 = vld [vmem:[%s3 + $0x10] sm:$0xff]
  %v113 = vld [vmem:[%s3 + $0x18] sm:$0xff]
  %v114 = vld [vmem:[%s3 + $0x20] sm:$0xff]
  %v115 = vld [vmem:[%s3 + $0x28] sm:$0xff]
  %v116 = vld [vmem:[%s3 + $0x30] sm:$0xff]
  %v117 = vld [vmem:[%s3 + $0x38] sm:$0xff]
  %v118 = vld [vmem:[%s4] sm:$0x1]
  %v120 = vlaneseq
  %v121 = vshrl.u32 %v120, 7
  %v122 = vsub.s32 0, %v121
  %v123 = vrot.slane %v118, %v122
  %vm125 = vcmask 523264
  %v127 = vsel %vm125, %v109, 0
  %129 = vmatprep.subr.mxu0 0.0
  %130 = vmatpush1.msra.mxu0 0.0
  %131 = vmatprep.subr.mxu0 0.0
  %132 = vmatpush1.msra.mxu0 0.0
  %133 = vmatprep.subr.mxu0 0.0
  %134 = vmatpush1.msra.mxu0 0.0
  %135 = vmatprep.subr.mxu0 0.0
  %136 = vmatpush1.msra.mxu0 0.0
  %137 = vmatprep.subr.mxu0 0.0
  %138 = vmatpush1.msra.mxu0 0.0
  %139 = vmatprep.subr.mxu0 0.0
  %140 = vmatpush1.msra.mxu0 0.0
  %141 = vmatprep.subr.mxu0 0.0
  %142 = vmatpush1.msra.mxu0 0.0
  %143 = vmatprep.subr.mxu0 0.0
  %144 = vmatpush1.msra.mxu0 0.0
  %145 = vmatprep.subr.mxu0 0.0
  %146 = vmatpush1.msra.mxu0 %v117
  %147 = vmatprep.subr.mxu0 0.0
  %148 = vmatpush1.msra.mxu0 %v116
  %149 = vmatprep.subr.mxu0 0.0
  %150 = vmatpush1.msra.mxu0 %v115
  %151 = vmatprep.subr.mxu0 0.0
  %152 = vmatpush1.msra.mxu0 %v114
  %153 = vmatprep.subr.mxu0 0.0
  %154 = vmatpush1.msra.mxu0 %v113
  %155 = vmatprep.subr.mxu0 0.0
  %156 = vmatpush1.msra.mxu0 %v112
  %157 = vmatprep.subr.mxu0 0.0
  %158 = vmatpush1.msra.mxu0 %v111
  %159 = vmatprep.subr.mxu0 0.0
  %160 = vmatpush1.msra.mxu0 %v110
  %161 = vmatprep.subr.mxu0 0.0
  %162 = vmatpush2.msra.mxu0 0.0
  %163 = vmatprep.subr.mxu0 0.0
  %164 = vmatpush2.msra.mxu0 0.0
  %165 = vmatprep.subr.mxu0 0.0
  %166 = vmatpush2.msra.mxu0 0.0
  %167 = vmatprep.subr.mxu0 0.0
  %168 = vmatpush2.msra.mxu0 0.0
  %169 = vmatprep.subr.mxu0 0.0
  %170 = vmatpush2.msra.mxu0 0.0
  %171 = vmatprep.subr.mxu0 0.0
  %172 = vmatpush2.msra.mxu0 0.0
  %173 = vmatprep.subr.mxu0 0.0
  %174 = vmatpush2.msra.mxu0 0.0
  %175 = vmatprep.subr.mxu0 0.0
  %176 = vmatpush2.msra.mxu0 0.0
  %177 = vmatprep.subr.mxu0 0.0
  %178 = vmatpush2.msra.mxu0 0.0
  %179 = vmatprep.subr.mxu0 0.0
  %180 = vmatpush2.msra.mxu0 0.0
  %181 = vmatprep.subr.mxu0 0.0
  %182 = vmatpush2.msra.mxu0 0.0
  %183 = vmatprep.subr.mxu0 0.0
  %184 = vmatpush2.msra.mxu0 0.0
  %185 = vmatprep.subr.mxu0 0.0
  %186 = vmatpush2.msra.mxu0 0.0
  %187 = vmatprep.subr.mxu0 0.0
  %188 = vmatpush2.msra.mxu0 0.0
  %189 = vmatprep.subr.mxu0 0.0
  %190 = vmatpush2.msra.mxu0 0.0
  %191 = vmatprep.subr.mxu0 0.0
  %192 = vmatpush2.msra.mxu0 0.0
  %193 = vmatprep.mubr.f32.mxu0 0.0
  %194 = vmatmul.mubr.f32.gmra.mxu0 %v127
  %v195 = vpop.f32.mrf.mxu0
  %v196 = vadd.f32 %v123, %v195
  %v197 = vpop.f32.mrf.mxu0
  %198 = vdwg.mxu0
  %v199 = vmax.f32 %v196, 0.0
  %s200 = scalar_lea.vmem %s3, 64
  %v201 = vld [vmem:[%s200] sm:$0xff]
  %v202 = vld [vmem:[%s200 + $0x8] sm:$0xff]
  %v203 = vld [vmem:[%s200 + $0x10] sm:$0xff]
  %v204 = vld [vmem:[%s200 + $0x18] sm:$0xff]
  %v205 = vld [vmem:[%s200 + $0x20] sm:$0xff]
  %v206 = vld [vmem:[%s200 + $0x28] sm:$0xff]
  %v207 = vld [vmem:[%s200 + $0x30] sm:$0xff]
  %v208 = vld [vmem:[%s200 + $0x38] sm:$0xff]
  %s209 = scalar_lea.vmem %s4, 1
  %v210 = vld [vmem:[%s209] sm:$0x1]
  %v212 = vlaneseq
  %v213 = vshrl.u32 %v212, 7
  %v214 = vsub.s32 0, %v213
  %v215 = vrot.slane %v210, %v214
  %v218 = vsel %vm125, %v199, 0
  %220 = vmatprep.subr.mxu0 0.0
  %221 = vmatpush1.msra.mxu0 0.0
  %222 = vmatprep.subr.mxu0 0.0
  %223 = vmatpush1.msra.mxu0 0.0
  %224 = vmatprep.subr.mxu0 0.0
  %225 = vmatpush1.msra.mxu0 0.0
  %226 = vmatprep.subr.mxu0 0.0
  %227 = vmatpush1.msra.mxu0 0.0
  %228 = vmatprep.subr.mxu0 0.0
  %229 = vmatpush1.msra.mxu0 0.0
  %230 = vmatprep.subr.mxu0 0.0
  %231 = vmatpush1.msra.mxu0 0.0
  %232 = vmatprep.subr.mxu0 0.0
  %233 = vmatpush1.msra.mxu0 0.0
  %234 = vmatprep.subr.mxu0 0.0
  %235 = vmatpush1.msra.mxu0 0.0
  %236 = vmatprep.subr.mxu0 0.0
  %237 = vmatpush1.msra.mxu0 %v208
  %238 = vmatprep.subr.mxu0 0.0
  %239 = vmatpush1.msra.mxu0 %v207
  %240 = vmatprep.subr.mxu0 0.0
  %241 = vmatpush1.msra.mxu0 %v206
  %242 = vmatprep.subr.mxu0 0.0
  %243 = vmatpush1.msra.mxu0 %v205
  %244 = vmatprep.subr.mxu0 0.0
  %245 = vmatpush1.msra.mxu0 %v204
  %246 = vmatprep.subr.mxu0 0.0
  %247 = vmatpush1.msra.mxu0 %v203
  %248 = vmatprep.subr.mxu0 0.0
  %249 = vmatpush1.msra.mxu0 %v202
  %250 = vmatprep.subr.mxu0 0.0
  %251 = vmatpush1.msra.mxu0 %v201
  %252 = vmatprep.subr.mxu0 0.0
  %253 = vmatpush2.msra.mxu0 0.0
  %254 = vmatprep.subr.mxu0 0.0
  %255 = vmatpush2.msra.mxu0 0.0
  %256 = vmatprep.subr.mxu0 0.0
  %257 = vmatpush2.msra.mxu0 0.0
  %258 = vmatprep.subr.mxu0 0.0
  %259 = vmatpush2.msra.mxu0 0.0
  %260 = vmatprep.subr.mxu0 0.0
  %261 = vmatpush2.msra.mxu0 0.0
  %262 = vmatprep.subr.mxu0 0.0
  %263 = vmatpush2.msra.mxu0 0.0
  %264 = vmatprep.subr.mxu0 0.0
  %265 = vmatpush2.msra.mxu0 0.0
  %266 = vmatprep.subr.mxu0 0.0
  %267 = vmatpush2.msra.mxu0 0.0
  %268 = vmatprep.subr.mxu0 0.0
  %269 = vmatpush2.msra.mxu0 0.0
  %270 = vmatprep.subr.mxu0 0.0
  %271 = vmatpush2.msra.mxu0 0.0
  %272 = vmatprep.subr.mxu0 0.0
  %273 = vmatpush2.msra.mxu0 0.0
  %274 = vmatprep.subr.mxu0 0.0
  %275 = vmatpush2.msra.mxu0 0.0
  %276 = vmatprep.subr.mxu0 0.0
  %277 = vmatpush2.msra.mxu0 0.0
  %278 = vmatprep.subr.mxu0 0.0
  %279 = vmatpush2.msra.mxu0 0.0
  %280 = vmatprep.subr.mxu0 0.0
  %281 = vmatpush2.msra.mxu0 0.0
  %282 = vmatprep.subr.mxu0 0.0
  %283 = vmatpush2.msra.mxu0 0.0
  %284 = vmatprep.mubr.f32.mxu0 0.0
  %285 = vmatmul.mubr.f32.gmra.mxu0 %v218
  %v286 = vpop.f32.mrf.mxu0
  %v287 = vadd.f32 %v215, %v286
  %v288 = vpop.f32.mrf.mxu0
  %289 = vdwg.mxu0
  %v290 = vmax.f32 %v287, 0.0
  %s291 = scalar_lea.vmem %s3, 128
  %v292 = vld [vmem:[%s291] sm:$0xff]
  %v293 = vld [vmem:[%s291 + $0x8] sm:$0xff]
  %v294 = vld [vmem:[%s291 + $0x10] sm:$0xff]
  %v295 = vld [vmem:[%s291 + $0x18] sm:$0xff]
  %v296 = vld [vmem:[%s291 + $0x20] sm:$0xff]
  %v297 = vld [vmem:[%s291 + $0x28] sm:$0xff]
  %v298 = vld [vmem:[%s291 + $0x30] sm:$0xff]
  %v299 = vld [vmem:[%s291 + $0x38] sm:$0xff]
  %s300 = scalar_lea.vmem %s4, 2
  %v301 = vld [vmem:[%s300] sm:$0x1]
  %v303 = vlaneseq
  %v304 = vshrl.u32 %v303, 7
  %v305 = vsub.s32 0, %v304
  %v306 = vrot.slane %v301, %v305
  %v309 = vsel %vm125, %v290, 0
  %311 = vmatprep.subr.mxu0 0.0
  %312 = vmatpush1.msra.mxu0 0.0
  %313 = vmatprep.subr.mxu0 0.0
  %314 = vmatpush1.msra.mxu0 0.0
  %315 = vmatprep.subr.mxu0 0.0
  %316 = vmatpush1.msra.mxu0 0.0
  %317 = vmatprep.subr.mxu0 0.0
  %318 = vmatpush1.msra.mxu0 0.0
  %319 = vmatprep.subr.mxu0 0.0
  %320 = vmatpush1.msra.mxu0 0.0
  %321 = vmatprep.subr.mxu0 0.0
  %322 = vmatpush1.msra.mxu0 0.0
  %323 = vmatprep.subr.mxu0 0.0
  %324 = vmatpush1.msra.mxu0 0.0
  %325 = vmatprep.subr.mxu0 0.0
  %326 = vmatpush1.msra.mxu0 0.0
  %327 = vmatprep.subr.mxu0 0.0
  %328 = vmatpush1.msra.mxu0 %v299
  %329 = vmatprep.subr.mxu0 0.0
  %330 = vmatpush1.msra.mxu0 %v298
  %331 = vmatprep.subr.mxu0 0.0
  %332 = vmatpush1.msra.mxu0 %v297
  %333 = vmatprep.subr.mxu0 0.0
  %334 = vmatpush1.msra.mxu0 %v296
  %335 = vmatprep.subr.mxu0 0.0
  %336 = vmatpush1.msra.mxu0 %v295
  %337 = vmatprep.subr.mxu0 0.0
  %338 = vmatpush1.msra.mxu0 %v294
  %339 = vmatprep.subr.mxu0 0.0
  %340 = vmatpush1.msra.mxu0 %v293
  %341 = vmatprep.subr.mxu0 0.0
  %342 = vmatpush1.msra.mxu0 %v292
  %343 = vmatprep.subr.mxu0 0.0
  %344 = vmatpush2.msra.mxu0 0.0
  %345 = vmatprep.subr.mxu0 0.0
  %346 = vmatpush2.msra.mxu0 0.0
  %347 = vmatprep.subr.mxu0 0.0
  %348 = vmatpush2.msra.mxu0 0.0
  %349 = vmatprep.subr.mxu0 0.0
  %350 = vmatpush2.msra.mxu0 0.0
  %351 = vmatprep.subr.mxu0 0.0
  %352 = vmatpush2.msra.mxu0 0.0
  %353 = vmatprep.subr.mxu0 0.0
  %354 = vmatpush2.msra.mxu0 0.0
  %355 = vmatprep.subr.mxu0 0.0
  %356 = vmatpush2.msra.mxu0 0.0
  %357 = vmatprep.subr.mxu0 0.0
  %358 = vmatpush2.msra.mxu0 0.0
  %359 = vmatprep.subr.mxu0 0.0
  %360 = vmatpush2.msra.mxu0 0.0
  %361 = vmatprep.subr.mxu0 0.0
  %362 = vmatpush2.msra.mxu0 0.0
  %363 = vmatprep.subr.mxu0 0.0
  %364 = vmatpush2.msra.mxu0 0.0
  %365 = vmatprep.subr.mxu0 0.0
  %366 = vmatpush2.msra.mxu0 0.0
  %367 = vmatprep.subr.mxu0 0.0
  %368 = vmatpush2.msra.mxu0 0.0
  %369 = vmatprep.subr.mxu0 0.0
  %370 = vmatpush2.msra.mxu0 0.0
  %371 = vmatprep.subr.mxu0 0.0
  %372 = vmatpush2.msra.mxu0 0.0
  %373 = vmatprep.subr.mxu0 0.0
  %374 = vmatpush2.msra.mxu0 0.0
  %375 = vmatprep.mubr.f32.mxu0 0.0
  %376 = vmatmul.mubr.f32.gmra.mxu0 %v309
  %v377 = vpop.f32.mrf.mxu0
  %v378 = vadd.f32 %v306, %v377
  %v379 = vpop.f32.mrf.mxu0
  %380 = vdwg.mxu0
  %v381 = vmax.f32 %v378, 0.0
  %v382 = vld [vmem:[%s5] sm:$0xff]
  %v383 = vld [vmem:[%s5 + $0x8] sm:$0xff]
  %v384 = vld [vmem:[%s5 + $0x10] sm:$0xff]
  %v385 = vld [vmem:[%s5 + $0x18] sm:$0xff]
  %v386 = vld [vmem:[%s5 + $0x20] sm:$0xff]
  %v387 = vld [vmem:[%s5 + $0x28] sm:$0xff]
  %v388 = vld [vmem:[%s5 + $0x30] sm:$0xff]
  %v389 = vld [vmem:[%s5 + $0x38] sm:$0xff]
  %v391 = vsel %vm125, %v381, 0
  %393 = vmatprep.subr.mxu0 0.0
  %394 = vmatpush1.msra.mxu0 0.0
  %395 = vmatprep.subr.mxu0 0.0
  %396 = vmatpush1.msra.mxu0 0.0
  %397 = vmatprep.subr.mxu0 0.0
  %398 = vmatpush1.msra.mxu0 0.0
  %399 = vmatprep.subr.mxu0 0.0
  %400 = vmatpush1.msra.mxu0 0.0
  %401 = vmatprep.subr.mxu0 0.0
  %402 = vmatpush1.msra.mxu0 0.0
  %403 = vmatprep.subr.mxu0 0.0
  %404 = vmatpush1.msra.mxu0 0.0
  %405 = vmatprep.subr.mxu0 0.0
  %406 = vmatpush1.msra.mxu0 0.0
  %407 = vmatprep.subr.mxu0 0.0
  %408 = vmatpush1.msra.mxu0 0.0
  %409 = vmatprep.subr.mxu0 0.0
  %410 = vmatpush1.msra.mxu0 %v389
  %411 = vmatprep.subr.mxu0 0.0
  %412 = vmatpush1.msra.mxu0 %v388
  %413 = vmatprep.subr.mxu0 0.0
  %414 = vmatpush1.msra.mxu0 %v387
  %415 = vmatprep.subr.mxu0 0.0
  %416 = vmatpush1.msra.mxu0 %v386
  %417 = vmatprep.subr.mxu0 0.0
  %418 = vmatpush1.msra.mxu0 %v385
  %419 = vmatprep.subr.mxu0 0.0
  %420 = vmatpush1.msra.mxu0 %v384
  %421 = vmatprep.subr.mxu0 0.0
  %422 = vmatpush1.msra.mxu0 %v383
  %423 = vmatprep.subr.mxu0 0.0
  %424 = vmatpush1.msra.mxu0 %v382
  %425 = vmatprep.subr.mxu0 0.0
  %426 = vmatpush2.msra.mxu0 0.0
  %427 = vmatprep.subr.mxu0 0.0
  %428 = vmatpush2.msra.mxu0 0.0
  %429 = vmatprep.subr.mxu0 0.0
  %430 = vmatpush2.msra.mxu0 0.0
  %431 = vmatprep.subr.mxu0 0.0
  %432 = vmatpush2.msra.mxu0 0.0
  %433 = vmatprep.subr.mxu0 0.0
  %434 = vmatpush2.msra.mxu0 0.0
  %435 = vmatprep.subr.mxu0 0.0
  %436 = vmatpush2.msra.mxu0 0.0
  %437 = vmatprep.subr.mxu0 0.0
  %438 = vmatpush2.msra.mxu0 0.0
  %439 = vmatprep.subr.mxu0 0.0
  %440 = vmatpush2.msra.mxu0 0.0
  %441 = vmatprep.subr.mxu0 0.0
  %442 = vmatpush2.msra.mxu0 0.0
  %443 = vmatprep.subr.mxu0 0.0
  %444 = vmatpush2.msra.mxu0 0.0
  %445 = vmatprep.subr.mxu0 0.0
  %446 = vmatpush2.msra.mxu0 0.0
  %447 = vmatprep.subr.mxu0 0.0
  %448 = vmatpush2.msra.mxu0 0.0
  %449 = vmatprep.subr.mxu0 0.0
  %450 = vmatpush2.msra.mxu0 0.0
  %451 = vmatprep.subr.mxu0 0.0
  %452 = vmatpush2.msra.mxu0 0.0
  %453 = vmatprep.subr.mxu0 0.0
  %454 = vmatpush2.msra.mxu0 0.0
  %455 = vmatprep.subr.mxu0 0.0
  %456 = vmatpush2.msra.mxu0 0.0
  %457 = vmatprep.mubr.f32.mxu0 0.0
  %458 = vmatmul.mubr.f32.gmra.mxu0 %v391
  %v459 = vpop.f32.mrf.mxu0
  %v460 = vadd.f32 0.0, %v459
  %v461 = vpop.f32.mrf.mxu0
  %462 = vdwg.mxu0
  %vm463 = vcmask 392192
  %464 = vst.msk [vmem:[%s6] sm:$0xff] %vm463, %v460
  // Predicated region
  $region26: #{nbeats_trend_block.1} parent=0 // pred_check
    _
  $region27: #{nbeats_trend_block.1} parent=0 // pred_check_branch
    %466 = sbr.rel (0) target = $region29
  $region28: #{nbeats_trend_block.1} parent=0 // pred_region
    _
  $region29: #{nbeats_trend_block.1} parent=0 // pred_fallthru
    _
  // Predicated region
  $region30: #{nbeats_trend_block.1} parent=0 // pred_check
    _
  $region31: #{nbeats_trend_block.1} parent=0 // pred_check_branch
    %468 = sbr.rel (0) target = $region33
  $region32: #{nbeats_trend_block.1} parent=0 // pred_region
    _
  $region33: #{nbeats_trend_block.1} parent=0 // pred_fallthru
    _

</llo_original>
